<compile_context>
chip_gen: v5e
topology: v5e:2x2
jax: 0.10.0
libtpu: 0.0.40
codegen_flags: <defaults>
</compile_context>

<pallas_src>
import jax
import jax.numpy as jnp
from jax.experimental import pallas as pl
from jax.experimental.pallas import tpu as pltpu


# ----------------------------------------------------------------------------
# Pallas kernel: one batch group (Nb batch elements) per grid step.
#   x1, x2 : (Nb*C, HW)  input-dtype slabs (f32 or bf16), lane dim = HW
#   w1, w2 : (Nb*IC, Nb*C)  block-diagonal folded conv+BN weights (f32, VMEM)
#   b      : (2*Nb*IC, 1)   folded biases for [branch1 ; branch2]
#   sel    : (Nb*C, Nb*IC)  kron(I_Nb, ones(C, IC)) — grouped sum + broadcast
#   wr     : (1, HW)        dim_reduce Conv1d weight (zero-padded tail)
# ----------------------------------------------------------------------------
def saem_kernel(x1_ref, x2_ref, w1_ref, w2_ref, b_ref, sel_ref, wr_ref, o_ref):
    x1 = x1_ref[0].astype(jnp.float32)            # (Nb*C, HW)
    x2 = x2_ref[0].astype(jnp.float32)            # (Nb*C, HW)
    nbic = w1_ref.shape[0]

    # Folded 1x1 conv + BN for both branches: two tiny f32 dots (weights in
    # VMEM — no per-term SMEM scalar loads / sreg->vreg splats).
    z1 = jnp.dot(w1_ref[...], x1, preferred_element_type=jnp.float32)  # (Nb*IC, HW)
    z2 = jnp.dot(w2_ref[...], x2, preferred_element_type=jnp.float32)  # (Nb*IC, HW)

    # One sigmoid (EUP) pass over the stacked slab of both branches.
    t = jax.nn.sigmoid(jnp.concatenate([z1, z2], axis=0) + b_ref[...])  # (2*Nb*IC, HW)
    t1 = t[:nbic]                                  # (Nb*IC, HW)
    t2 = t[nbic:]                                  # (Nb*IC, HW)

    # Reassociated attention (the HW x HW affinity is never built):
    #   v[k]   = sum_hw2 t2[k, hw2] * wr[hw2]      -> one XLU lane reduce
    #   att[l] = sum_{k in group} v[k] * t1[k, l]  -> selector dot below
    v = jnp.sum(t2 * wr_ref[...], axis=-1, keepdims=True)               # (Nb*IC, 1)
    s = v * t1                                                           # (Nb*IC, HW)
    # Grouped per-batch sum over IC and broadcast to the C channel rows in
    # one dense dot -> a single lane-dense (Nb*C, HW) store.
    att = jnp.dot(sel_ref[...], s, preferred_element_type=jnp.float32)  # (Nb*C, HW)

    o_ref[0] = (x1 * att).astype(o_ref.dtype)


# ----------------------------------------------------------------------------
# Nb (batch elements per grid step) selection.
# ----------------------------------------------------------------------------
def _pick_batch_block(n, c, hwp, itemsize, block_budget_bytes):
    """Largest Nb such that
         * Nb divides N,
         * the double-buffered x1/x2/out blocks fit the VMEM budget
           (budget sized for v7x's 64 MiB VMEM; v5e/v6e have more headroom),
         * the grid keeps >= 2 steps when N >= 2, so the "parallel" batch
           axis can be sharded over both v7x TensorCores.
       Larger Nb also raises sublane occupancy (Nb*C toward a multiple of 8)
       and amortizes the ~0.35 us per-grid-step overhead."""
    per_nb = 3 * 2 * c * hwp * itemsize      # x1 + x2 + out, double-buffered
    best = 1
    for d in range(1, n + 1):
        if n % d:
            continue
        if d * per_nb > block_budget_bytes:
            continue
        if n >= 2 and n // d < 2:
            continue
        best = d
    return best


# ----------------------------------------------------------------------------
# Wrapper: NCHW <-> (N//Nb, Nb*C, HWp) is a free reshape (no transpose);
# pad HW to a multiple of 128 only if needed (zero-padding wr keeps the
# reduction exact).
# ----------------------------------------------------------------------------
def spatial_enhance_module(x1_nchw, x2_nchw, params,
                           *, block_budget_bytes=20 * 1024 * 1024):
    N, C, H, W = x1_nchw.shape
    HW = H * W
    IC = params["b1"].shape[0]
    dtype = x1_nchw.dtype

    HWp = ((HW + 127) // 128) * 128              # lane-dense spatial dim
    Nb = _pick_batch_block(N, C, HWp, jnp.dtype(dtype).itemsize,
                           block_budget_bytes)
    Gb = N // Nb

    def prep(x):
        xf = x.reshape(N, C, HW)
        if HWp != HW:
            xf = jnp.pad(xf, ((0, 0), (0, 0), (0, HWp - HW)))
        return xf.reshape(Gb, Nb * C, HWp)       # zero-cost grouping reshape

    x1g = prep(x1_nchw)
    x2g = prep(x2_nchw)

    # Tiny per-call constants (block-diagonal folded weights, biases, selector).
    eye = jnp.eye(Nb, dtype=jnp.float32)
    w1b = jnp.kron(eye, params["w1"].astype(jnp.float32))       # (Nb*IC, Nb*C)
    w2b = jnp.kron(eye, params["w2"].astype(jnp.float32))       # (Nb*IC, Nb*C)
    bcat = jnp.concatenate([jnp.tile(params["b1"], Nb),
                            jnp.tile(params["b2"], Nb)]
                           ).astype(jnp.float32)[:, None]        # (2*Nb*IC, 1)
    sel = jnp.kron(eye, jnp.ones((C, IC), jnp.float32))          # (Nb*C, Nb*IC)
    wr = params["wr"].reshape(1, HW).astype(jnp.float32)
    if HWp != HW:
        wr = jnp.pad(wr, ((0, 0), (0, HWp - HW)))

    def full_spec(arr):
        return pl.BlockSpec(arr.shape, lambda n: (0, 0))

    out = pl.pallas_call(
        saem_kernel,
        out_shape=jax.ShapeDtypeStruct((Gb, Nb * C, HWp), dtype),
        grid_spec=pltpu.PrefetchScalarGridSpec(
            num_scalar_prefetch=0,
            grid=(Gb,),
            in_specs=[
                pl.BlockSpec((1, Nb * C, HWp), lambda n: (n, 0, 0)),   # x1
                pl.BlockSpec((1, Nb * C, HWp), lambda n: (n, 0, 0)),   # x2
                full_spec(w1b),                                        # w1 block-diag
                full_spec(w2b),                                        # w2 block-diag
                full_spec(bcat),                                       # biases
                full_spec(sel),                                        # selector
                full_spec(wr),                                         # wr (lane-dense)
            ],
            out_specs=pl.BlockSpec((1, Nb * C, HWp), lambda n: (n, 0, 0)),
        ),
        compiler_params=pltpu.CompilerParams(
            dimension_semantics=("parallel",),       # shard batch groups over TCs
            vmem_limit_bytes=48 * 1024 * 1024),      # < v7x 64 MiB physical VMEM
    )(x1g, x2g, w1b, w2b, bcat, sel, wr)

    out = out.reshape(N, C, HWp)
    if HWp != HW:
        out = out[:, :, :HW]
    return out.reshape(N, C, H, W)


# ----------------------------------------------------------------------------
# Parameter construction (deterministic) + conv/BN folding.
# ----------------------------------------------------------------------------
def fold_conv_bn(w, b, gamma, beta, mean, var, eps=1e-5):
    """w: (OC, C) 1x1 conv weight, b: (OC,). Returns folded ((OC, C), (OC,))."""
    scale = gamma / jnp.sqrt(var + eps)
    w_fold = w * scale[:, None]
    b_fold = (b - mean) * scale + beta
    return w_fold.astype(jnp.float32), b_fold.astype(jnp.float32)


def init_params(key, in_channels, inter_channels, size):
    ks = jax.random.split(key, 12)
    HW = size * size
    C, IC = in_channels, inter_channels

    # T1 branch: conv1x1 + BN (inference-mode running stats)
    w1 = 0.2 * jax.random.normal(ks[0], (IC, C), jnp.float32)
    b1 = 0.1 * jax.random.normal(ks[1], (IC,), jnp.float32)
    g1 = 1.0 + 0.05 * jax.random.normal(ks[2], (IC,), jnp.float32)
    be1 = 0.05 * jax.random.normal(ks[3], (IC,), jnp.float32)
    m1 = 0.1 * jax.random.normal(ks[4], (IC,), jnp.float32)
    v1 = jnp.abs(jax.random.normal(ks[5], (IC,), jnp.float32)) + 0.5

    # T2 branch
    w2 = 0.2 * jax.random.normal(ks[6], (IC, C), jnp.float32)
    b2 = 0.1 * jax.random.normal(ks[7], (IC,), jnp.float32)
    g2 = 1.0 + 0.05 * jax.random.normal(ks[8], (IC,), jnp.float32)
    be2 = 0.05 * jax.random.normal(ks[9], (IC,), jnp.float32)
    m2 = 0.1 * jax.random.normal(ks[10], (IC,), jnp.float32)
    v2 = jnp.abs(jax.random.normal(ks[11], (IC,), jnp.float32)) + 0.5

    # dim_reduce Conv1d(HW -> 1, kernel=1, bias=False)
    wr = (jax.random.normal(jax.random.fold_in(key, 99), (HW,), jnp.float32)
          / float(HW))

    w1f, b1f = fold_conv_bn(w1, b1, g1, be1, m1, v1)
    w2f, b2f = fold_conv_bn(w2, b2, g2, be2, m2, v2)
    return {"w1": w1f, "b1": b1f, "w2": w2f, "b2": b2f,
            "wr": wr[None, :].astype(jnp.float32)}


# ----------------------------------------------------------------------------
# Pure-JAX reference mirroring the PyTorch forward (eval-mode BN folded),
# kept in the ORIGINAL (non-reassociated) form with the explicit HWxHW
# affinity matrix, so the kernel's algebraic rewrite is checked against it.
# ----------------------------------------------------------------------------
def ref_forward(x1, x2, params):
    N, C, H, W = x1.shape
    HW = H * W
    IC = params["w1"].shape[0]

    t1 = jax.nn.sigmoid(
        jnp.einsum("kc,nchw->nkhw", params["w1"], x1)
        + params["b1"].reshape(1, IC, 1, 1)).reshape(N, IC, HW)
    t2 = jax.nn.sigmoid(
        jnp.einsum("kc,nchw->nkhw", params["w2"], x2)
        + params["b2"].reshape(1, IC, 1, 1)).reshape(N, IC, HW)

    t1p = jnp.transpose(t1, (0, 2, 1))              # (N, HW1, IC)
    aff = jnp.matmul(t1p, t2)                       # (N, HW1, HW2)
    aff_p = jnp.transpose(aff, (0, 2, 1))           # (N, HW2, HW1)
    wr = params["wr"][0]                            # (HW,)
    att = jnp.einsum("k,nkl->nl", wr, aff_p)        # (N, HW1)
    att = att.reshape(N, 1, H, W)
    return x1 * att


# ----------------------------------------------------------------------------
if __name__ == "__main__":
    N, C, H, W = 2, 4, 16, 16            # small shapes consistent with forward
    IC = C // 2                          # inter_channels defaults to C // 2

    key = jax.random.PRNGKey(0)
    kx1, kx2, kp = jax.random.split(key, 3)
    x1 = jax.random.normal(kx1, (N, C, H, W), jnp.float32)
    x2 = jax.random.normal(kx2, (N, C, H, W), jnp.float32)

    params = init_params(kp, C, IC, size=H)

    # f32 path: strict correctness check against the explicit-affinity ref.
    out = jax.block_until_ready(spatial_enhance_module(x1, x2, params))
    ref = ref_forward(x1, x2, params)
    assert out.shape == (N, C, H, W)
    assert jnp.allclose(out, ref, atol=1e-4, rtol=1e-4), \
        float(jnp.max(jnp.abs(out - ref)))

    # bf16 I/O path (mem-bound kernel: halving bytes ~= 2x at the roofline).
    # Compute inside the kernel stays f32; tolerance covers bf16 quantization.
    x1b = x1.astype(jnp.bfloat16)
    x2b = x2.astype(jnp.bfloat16)
    outb = jax.block_until_ready(spatial_enhance_module(x1b, x2b, params))
    refb = ref_forward(x1b.astype(jnp.float32), x2b.astype(jnp.float32), params)
    assert outb.dtype == jnp.bfloat16
    assert jnp.allclose(outb.astype(jnp.float32), refb, atol=3e-2, rtol=3e-2), \
        float(jnp.max(jnp.abs(outb.astype(jnp.float32) - refb)))

    # TODO(synk): BatchNorm is realized in inference mode (running stats
    # folded into the 1x1 conv); training-mode batch statistics are not
    # reproduced inside the kernel.
    print("KERNEL_OK")
</pallas_src>

<mosaic_0001>
module attributes {stable_mosaic.version = 11 : i64} {
  func.func @saem_kernel(%arg0: i32, %arg1: memref<1x4x256xf32, #tpu.memory_space<vmem>>, %arg2: memref<1x4x256xf32, #tpu.memory_space<vmem>>, %arg3: memref<2x4xf32, #tpu.memory_space<vmem>>, %arg4: memref<2x4xf32, #tpu.memory_space<vmem>>, %arg5: memref<4x1xf32, #tpu.memory_space<vmem>>, %arg6: memref<4x2xf32, #tpu.memory_space<vmem>>, %arg7: memref<1x256xf32, #tpu.memory_space<vmem>>, %arg8: memref<1x4x256xf32, #tpu.memory_space<vmem>>) attributes {dimension_semantics = [#tpu.dimension_semantics<parallel>], iteration_bounds = array<i64: 2>, scalar_prefetch = 0 : i64, scratch_operands = 0 : i64, tpu.core_type = #tpu.core_type<tc>, window_params = [{transform_indices = @transform_0, window_bounds = array<i64: 1, 4, 256>}, {transform_indices = @transform_1, window_bounds = array<i64: 1, 4, 256>}, {pipeline_mode = #tpu.pipeline_mode<synchronous>, transform_indices = @transform_2, window_bounds = array<i64: 2, 4>}, {pipeline_mode = #tpu.pipeline_mode<synchronous>, transform_indices = @transform_3, window_bounds = array<i64: 2, 4>}, {pipeline_mode = #tpu.pipeline_mode<synchronous>, transform_indices = @transform_4, window_bounds = array<i64: 4, 1>}, {pipeline_mode = #tpu.pipeline_mode<synchronous>, transform_indices = @transform_5, window_bounds = array<i64: 4, 2>}, {pipeline_mode = #tpu.pipeline_mode<synchronous>, transform_indices = @transform_6, window_bounds = array<i64: 1, 256>}, {transform_indices = @transform_7, window_bounds = array<i64: 1, 4, 256>}]} {
    %c0 = arith.constant 0 : index
    %c0_0 = arith.constant 0 : index
    %c0_1 = arith.constant 0 : index
    %0 = vector.load %arg1[%c0, %c0_0, %c0_1] : memref<1x4x256xf32, #tpu.memory_space<vmem>>, vector<1x4x256xf32>
    %1 = vector.shape_cast %0 : vector<1x4x256xf32> to vector<4x256xf32>
    %c0_2 = arith.constant 0 : index
    %c0_3 = arith.constant 0 : index
    %c0_4 = arith.constant 0 : index
    %2 = vector.load %arg2[%c0_2, %c0_3, %c0_4] : memref<1x4x256xf32, #tpu.memory_space<vmem>>, vector<1x4x256xf32>
    %3 = vector.shape_cast %2 : vector<1x4x256xf32> to vector<4x256xf32>
    %c0_5 = arith.constant 0 : index
    %c0_6 = arith.constant 0 : index
    %4 = vector.load %arg3[%c0_5, %c0_6] : memref<2x4xf32, #tpu.memory_space<vmem>>, vector<2x4xf32>
    %cst = arith.constant dense<0.000000e+00> : vector<2x256xf32>
    %5 = tpu.matmul %4, %1, %cst {dimension_numbers = #tpu.dot_dimension_numbers<[1], [0], [0], [1], [0, 0, 1, 1], [], []>} : vector<2x4xf32>, vector<4x256xf32>, vector<2x256xf32> -> vector<2x256xf32>
    %c0_7 = arith.constant 0 : index
    %c0_8 = arith.constant 0 : index
    %6 = vector.load %arg4[%c0_7, %c0_8] : memref<2x4xf32, #tpu.memory_space<vmem>>, vector<2x4xf32>
    %cst_9 = arith.constant dense<0.000000e+00> : vector<2x256xf32>
    %7 = tpu.matmul %6, %3, %cst_9 {dimension_numbers = #tpu.dot_dimension_numbers<[1], [0], [0], [1], [0, 0, 1, 1], [], []>} : vector<2x4xf32>, vector<4x256xf32>, vector<2x256xf32> -> vector<2x256xf32>
    %8 = tpu.concatenate %5, %7 in 0 : vector<2x256xf32>, vector<2x256xf32> -> vector<4x256xf32>
    %c0_10 = arith.constant 0 : index
    %c0_11 = arith.constant 0 : index
    %9 = vector.load %arg5[%c0_10, %c0_11] : memref<4x1xf32, #tpu.memory_space<vmem>>, vector<4x1xf32>
    %10 = vector.broadcast %9 : vector<4x1xf32> to vector<4x256xf32>
    %11 = arith.addf %8, %10 : vector<4x256xf32>
    %12 = arith.negf %11 : vector<4x256xf32>
    %13 = math.exp %12 : vector<4x256xf32>
    %cst_12 = arith.constant 1.000000e+00 : f32
    %14 = vector.broadcast %cst_12 : f32 to vector<4x256xf32>
    %15 = arith.addf %14, %13 : vector<4x256xf32>
    %16 = arith.divf %14, %15 : vector<4x256xf32>
    %17 = vector.extract_strided_slice %16 {offsets = [0, 0], sizes = [2, 256], strides = [1, 1]} : vector<4x256xf32> to vector<2x256xf32>
    %18 = vector.extract_strided_slice %16 {offsets = [2, 0], sizes = [2, 256], strides = [1, 1]} : vector<4x256xf32> to vector<2x256xf32>
    %c0_13 = arith.constant 0 : index
    %c0_14 = arith.constant 0 : index
    %19 = vector.load %arg7[%c0_13, %c0_14] : memref<1x256xf32, #tpu.memory_space<vmem>>, vector<1x256xf32>
    %20 = vector.broadcast %19 : vector<1x256xf32> to vector<2x256xf32>
    %21 = arith.mulf %18, %20 : vector<2x256xf32>
    %cst_15 = arith.constant dense<0.000000e+00> : vector<2xf32>
    %22 = vector.multi_reduction <add>, %21, %cst_15 [1] : vector<2x256xf32> to vector<2xf32>
    %23 = vector.shape_cast %22 : vector<2xf32> to vector<2x1xf32>
    %24 = vector.broadcast %23 : vector<2x1xf32> to vector<2x256xf32>
    %25 = arith.mulf %24, %17 : vector<2x256xf32>
    %c0_16 = arith.constant 0 : index
    %c0_17 = arith.constant 0 : index
    %26 = vector.load %arg6[%c0_16, %c0_17] : memref<4x2xf32, #tpu.memory_space<vmem>>, vector<4x2xf32>
    %cst_18 = arith.constant dense<0.000000e+00> : vector<4x256xf32>
    %27 = tpu.matmul %26, %25, %cst_18 {dimension_numbers = #tpu.dot_dimension_numbers<[1], [0], [0], [1], [0, 0, 1, 1], [], []>} : vector<4x2xf32>, vector<2x256xf32>, vector<4x256xf32> -> vector<4x256xf32>
    %28 = arith.mulf %1, %27 : vector<4x256xf32>
    %c0_19 = arith.constant 0 : index
    %c0_20 = arith.constant 0 : index
    %c0_21 = arith.constant 0 : index
    %29 = vector.load %arg8[%c0_19, %c0_20, %c0_21] : memref<1x4x256xf32, #tpu.memory_space<vmem>>, vector<1x4x256xf32>
    %30 = vector.shape_cast %29 : vector<1x4x256xf32> to vector<4x256xf32>
    %31 = vector.shape_cast %28 : vector<4x256xf32> to vector<1x4x256xf32>
    tpu.vector_store %arg8[%c0_19, %c0_20, %c0_21], %31 {strides = array<i32>} : memref<1x4x256xf32, #tpu.memory_space<vmem>>, vector<1x4x256xf32>,
    return
  }
  func.func @transform_0(%arg0: i32) -> (i32, i32, i32) {
    %c0_i32 = arith.constant 0 : i32
    %c0_i32_0 = arith.constant 0 : i32
    %c0_i32_1 = arith.constant 0 : i32
    return %arg0, %c0_i32, %c0_i32_0 : i32, i32, i32
  }
  func.func @transform_1(%arg0: i32) -> (i32, i32, i32) {
    %c0_i32 = arith.constant 0 : i32
    %c0_i32_0 = arith.constant 0 : i32
    %c0_i32_1 = arith.constant 0 : i32
    return %arg0, %c0_i32, %c0_i32_0 : i32, i32, i32
  }
  func.func @transform_2(%arg0: i32) -> (i32, i32) {
    %c0_i32 = arith.constant 0 : i32
    %c0_i32_0 = arith.constant 0 : i32
    %c0_i32_1 = arith.constant 0 : i32
    return %c0_i32, %c0_i32_0 : i32, i32
  }
  func.func @transform_3(%arg0: i32) -> (i32, i32) {
    %c0_i32 = arith.constant 0 : i32
    %c0_i32_0 = arith.constant 0 : i32
    %c0_i32_1 = arith.constant 0 : i32
    return %c0_i32, %c0_i32_0 : i32, i32
  }
  func.func @transform_4(%arg0: i32) -> (i32, i32) {
    %c0_i32 = arith.constant 0 : i32
    %c0_i32_0 = arith.constant 0 : i32
    %c0_i32_1 = arith.constant 0 : i32
    return %c0_i32, %c0_i32_0 : i32, i32
  }
  func.func @transform_5(%arg0: i32) -> (i32, i32) {
    %c0_i32 = arith.constant 0 : i32
    %c0_i32_0 = arith.constant 0 : i32
    %c0_i32_1 = arith.constant 0 : i32
    return %c0_i32, %c0_i32_0 : i32, i32
  }
  func.func @transform_6(%arg0: i32) -> (i32, i32) {
    %c0_i32 = arith.constant 0 : i32
    %c0_i32_0 = arith.constant 0 : i32
    %c0_i32_1 = arith.constant 0 : i32
    return %c0_i32, %c0_i32_0 : i32, i32
  }
  func.func @transform_7(%arg0: i32) -> (i32, i32, i32) {
    %c0_i32 = arith.constant 0 : i32
    %c0_i32_0 = arith.constant 0 : i32
    %c0_i32_1 = arith.constant 0 : i32
    return %arg0, %c0_i32, %c0_i32_0 : i32, i32, i32
  }
}

</mosaic_0001>

<llo_original>
// kernel: tpu_custom_call.1
$region0: #{tpu_custom_call.1}
  #allocation0 [shape = 'u32[]', space=smem, size = 0x4, offset = 0x4, fixed_abs, tag = 'smem constant byte address 0x4 - core index']
  #allocation1 [shape = 'u32[72,128]{1,0:T(1,128)}', space=vmem, size = 0x9000, scoped, tag = 'internal scratch']
  %s0 = inlined_call_operand.hbm [shape: f32[2,4,256], index: 0, kind: input, shape index: {}]
  %s1 = inlined_call_operand.hbm [shape: f32[2,4,256], index: 1, kind: input, shape index: {}]
  %s2 = inlined_call_operand.vmem [shape: f32[2,4], index: 2, kind: input, shape index: {}]
  %s3 = inlined_call_operand.vmem [shape: f32[2,4], index: 3, kind: input, shape index: {}]
  %s4 = inlined_call_operand.vmem [shape: f32[4,1], index: 4, kind: input, shape index: {}]
  %s5 = inlined_call_operand.vmem [shape: f32[4,2], index: 5, kind: input, shape index: {}]
  %s6 = inlined_call_operand.vmem [shape: f32[1,256], index: 6, kind: input, shape index: {}]
  %s7 = inlined_call_operand.hbm [shape: f32[2,4,256], index: 7, kind: output, shape index: {}]
  %s8 = sld [smem:[#allocation0]]
  $region69: #{tpu_custom_call.1} parent=0
    _
  %s10 = ssub.s32 1, %s8
  %s11 = scalar_select 0, %s10, %s8
  $region1: #{tpu_custom_call.1} parent=0
    #allocation2 [shape = 'u8[8192]{0}', space=vmem, size = 0x2000, scoped, tag = 'input window, operand 0']
    #allocation3 [shape = 's32[2]{0}', space=sflag, size = 0x8, scoped, tag = 'scoped memory for tpu_custom_call.1']
    #allocation4 [shape = 's32[2]{0}', space=sflag, size = 0x8, scoped, tag = 'scoped memory for tpu_custom_call.1']
    #allocation5 [shape = 'u8[8192]{0}', space=vmem, size = 0x2000, scoped, tag = 'input window, operand 1']
    #allocation6 [shape = 's32[2]{0}', space=sflag, size = 0x8, scoped, tag = 'scoped memory for tpu_custom_call.1']
    #allocation7 [shape = 'u8[8192]{0}', space=vmem, size = 0x2000, scoped, tag = 'output window, operand 0']
    %12 = vsyncpa [#allocation3], 0
    %s13 = scalar_lea.sflag [#allocation3], 1
    %14 = vsyncpa %s13, 0
    %15 = vsyncpa [#allocation6], 0
    %s16 = scalar_lea.sflag [#allocation6], 1
    %17 = vsyncpa %s16, 0
    %18 = vsyncpa [#allocation4], 0
    %s19 = scalar_lea.sflag [#allocation4], 1
    %20 = vsyncpa %s19, 0
    loop: start=0, step=1, limit=4
    $region2: #{tpu_custom_call.1} parent=1 // loop_pre_header
      _
    $region3: #{tpu_custom_call.1} parent=1 // loop_header
      %s22 = sphi 0, %s26
      %p23 = scmp.ge.s32.totalorder %s22, 4
      %s32 = sphi 0, %s34
      %s35 = sphi 0, %s32
      %s36 = sphi 0, %s35
      %s52 = sphi 0, %s36
      %s58 = sphi 0, %s60
      %s61 = sphi 0, %s58
      %s62 = sphi 0, %s61
      %s78 = sphi 0, %s62
      %s82 = sphi 0, %s82
      %s84 = sphi 0, %s82
      %s85 = sphi 0, %s84
      %s99 = sphi 0, %s85
      %s103 = sphi 0, %s103
      %s105 = sphi 0, %s103
      %s106 = sphi 0, %s105
      %s120 = sphi 0, %s106
      %s124 = sphi 0, %s124
      %s126 = sphi 0, %s124
      %s127 = sphi 0, %s126
      %s141 = sphi 0, %s127
      %s145 = sphi 0, %s145
      %s147 = sphi 0, %s145
      %s148 = sphi 0, %s147
      %s162 = sphi 0, %s148
      %s166 = sphi 0, %s166
      %s168 = sphi 0, %s166
      %s169 = sphi 0, %s168
      %s183 = sphi 0, %s169
      %s189 = sphi 0, %s191
      %s192 = sphi 0, %s189
      %s193 = sphi 0, %s192
      %s209 = sphi 0, %s193
    $region4: #{tpu_custom_call.1} parent=1 // loop_header_branch
      %25 = sbr.rel (%p23) target = $region8
    $region5: #{tpu_custom_call.1} parent=1 // loop_body
      %s27 = ssub.s32 %s22, 1
      %s28 = ssub.s32 %s22, 2
      %s29 = sadd.s32 %s22, 1
      %s30 = ssub.s32 %s22, %s29
      %p31 = scmp.eq.s32.totalorder %s30, 0
      %s33 = sadd.s32 %s32, 1
      %s34 = scalar_select %p31, %s32, %s33
      %p37 = pneg %p31
      %p38 = scmp.eq.s32.totalorder %s22, 1
      %p39 = por %p37, %p38
      %p40 = scmp.ne.s32.totalorder %s32, %s35
      %p41 = scmp.eq.s32.totalorder %s22, 0
      %p42 = por %p40, %p41
      %p43 = scmp.ne.s32.totalorder %s32, %s35
      %p44 = scmp.eq.s32.totalorder %s27, 1
      %p45 = por %p43, %p44
      %p46 = scmp.ne.s32.totalorder %s35, %s36
      %p47 = scmp.eq.s32.totalorder %s27, 0
      %p48 = por %p46, %p47
      %p49 = scmp.ne.s32.totalorder %s35, %s36
      %p50 = scmp.eq.s32.totalorder %s28, 1
      %p51 = por %p49, %p50
      %p53 = scmp.ne.s32.totalorder %s36, %s52
      %p54 = scmp.eq.s32.totalorder %s28, 0
      %p55 = por %p53, %p54
      %s56 = ssub.s32 %s22, %s29
      %p57 = scmp.eq.s32.totalorder %s56, 0
      %s59 = sadd.s32 %s58, 1
      %s60 = scalar_select %p57, %s58, %s59
      %p63 = pneg %p57
      %p64 = scmp.eq.s32.totalorder %s22, 1
      %p65 = por %p63, %p64
      %p66 = scmp.ne.s32.totalorder %s58, %s61
      %p67 = scmp.eq.s32.totalorder %s22, 0
      %p68 = por %p66, %p67
      %p69 = scmp.ne.s32.totalorder %s58, %s61
      %p70 = scmp.eq.s32.totalorder %s27, 1
      %p71 = por %p69, %p70
      %p72 = scmp.ne.s32.totalorder %s61, %s62
      %p73 = scmp.eq.s32.totalorder %s27, 0
      %p74 = por %p72, %p73
      %p75 = scmp.ne.s32.totalorder %s61, %s62
      %p76 = scmp.eq.s32.totalorder %s28, 1
      %p77 = por %p75, %p76
      %p79 = scmp.ne.s32.totalorder %s62, %s78
      %p80 = scmp.eq.s32.totalorder %s28, 0
      %p81 = por %p79, %p80
      %s83 = sadd.s32 %s82, 1
      %p86 = scmp.eq.s32.totalorder %s22, 1
      %p87 = scmp.ne.s32.totalorder %s82, %s84
      %p88 = scmp.eq.s32.totalorder %s22, 0
      %p89 = por %p87, %p88
      %p90 = scmp.ne.s32.totalorder %s82, %s84
      %p91 = scmp.eq.s32.totalorder %s27, 1
      %p92 = por %p90, %p91
      %p93 = scmp.ne.s32.totalorder %s84, %s85
      %p94 = scmp.eq.s32.totalorder %s27, 0
      %p95 = por %p93, %p94
      %p96 = scmp.ne.s32.totalorder %s84, %s85
      %p97 = scmp.eq.s32.totalorder %s28, 1
      %p98 = por %p96, %p97
      %p100 = scmp.ne.s32.totalorder %s85, %s99
      %p101 = scmp.eq.s32.totalorder %s28, 0
      %p102 = por %p100, %p101
      %s104 = sadd.s32 %s103, 1
      %p107 = scmp.eq.s32.totalorder %s22, 1
      %p108 = scmp.ne.s32.totalorder %s103, %s105
      %p109 = scmp.eq.s32.totalorder %s22, 0
      %p110 = por %p108, %p109
      %p111 = scmp.ne.s32.totalorder %s103, %s105
      %p112 = scmp.eq.s32.totalorder %s27, 1
      %p113 = por %p111, %p112
      %p114 = scmp.ne.s32.totalorder %s105, %s106
      %p115 = scmp.eq.s32.totalorder %s27, 0
      %p116 = por %p114, %p115
      %p117 = scmp.ne.s32.totalorder %s105, %s106
      %p118 = scmp.eq.s32.totalorder %s28, 1
      %p119 = por %p117, %p118
      %p121 = scmp.ne.s32.totalorder %s106, %s120
      %p122 = scmp.eq.s32.totalorder %s28, 0
      %p123 = por %p121, %p122
      %s125 = sadd.s32 %s124, 1
      %p128 = scmp.eq.s32.totalorder %s22, 1
      %p129 = scmp.ne.s32.totalorder %s124, %s126
      %p130 = scmp.eq.s32.totalorder %s22, 0
      %p131 = por %p129, %p130
      %p132 = scmp.ne.s32.totalorder %s124, %s126
      %p133 = scmp.eq.s32.totalorder %s27, 1
      %p134 = por %p132, %p133
      %p135 = scmp.ne.s32.totalorder %s126, %s127
      %p136 = scmp.eq.s32.totalorder %s27, 0
      %p137 = por %p135, %p136
      %p138 = scmp.ne.s32.totalorder %s126, %s127
      %p139 = scmp.eq.s32.totalorder %s28, 1
      %p140 = por %p138, %p139
      %p142 = scmp.ne.s32.totalorder %s127, %s141
      %p143 = scmp.eq.s32.totalorder %s28, 0
      %p144 = por %p142, %p143
      %s146 = sadd.s32 %s145, 1
      %p149 = scmp.eq.s32.totalorder %s22, 1
      %p150 = scmp.ne.s32.totalorder %s145, %s147
      %p151 = scmp.eq.s32.totalorder %s22, 0
      %p152 = por %p150, %p151
      %p153 = scmp.ne.s32.totalorder %s145, %s147
      %p154 = scmp.eq.s32.totalorder %s27, 1
      %p155 = por %p153, %p154
      %p156 = scmp.ne.s32.totalorder %s147, %s148
      %p157 = scmp.eq.s32.totalorder %s27, 0
      %p158 = por %p156, %p157
      %p159 = scmp.ne.s32.totalorder %s147, %s148
      %p160 = scmp.eq.s32.totalorder %s28, 1
      %p161 = por %p159, %p160
      %p163 = scmp.ne.s32.totalorder %s148, %s162
      %p164 = scmp.eq.s32.totalorder %s28, 0
      %p165 = por %p163, %p164
      %s167 = sadd.s32 %s166, 1
      %p170 = scmp.eq.s32.totalorder %s22, 1
      %p171 = scmp.ne.s32.totalorder %s166, %s168
      %p172 = scmp.eq.s32.totalorder %s22, 0
      %p173 = por %p171, %p172
      %p174 = scmp.ne.s32.totalorder %s166, %s168
      %p175 = scmp.eq.s32.totalorder %s27, 1
      %p176 = por %p174, %p175
      %p177 = scmp.ne.s32.totalorder %s168, %s169
      %p178 = scmp.eq.s32.totalorder %s27, 0
      %p179 = por %p177, %p178
      %p180 = scmp.ne.s32.totalorder %s168, %s169
      %p181 = scmp.eq.s32.totalorder %s28, 1
      %p182 = por %p180, %p181
      %p184 = scmp.ne.s32.totalorder %s169, %s183
      %p185 = scmp.eq.s32.totalorder %s28, 0
      %p186 = por %p184, %p185
      %s187 = ssub.s32 %s22, %s29
      %p188 = scmp.eq.s32.totalorder %s187, 0
      %s190 = sadd.s32 %s189, 1
      %s191 = scalar_select %p188, %s189, %s190
      %p194 = pneg %p188
      %p195 = scmp.eq.s32.totalorder %s22, 1
      %p196 = por %p194, %p195
      %p197 = scmp.ne.s32.totalorder %s189, %s192
      %p198 = scmp.eq.s32.totalorder %s22, 0
      %p199 = por %p197, %p198
      %p200 = scmp.ne.s32.totalorder %s189, %s192
      %p201 = scmp.eq.s32.totalorder %s27, 1
      %p202 = por %p200, %p201
      %p203 = scmp.ne.s32.totalorder %s192, %s193
      %p204 = scmp.eq.s32.totalorder %s27, 0
      %p205 = por %p203, %p204
      %p206 = scmp.ne.s32.totalorder %s192, %s193
      %p207 = scmp.eq.s32.totalorder %s28, 1
      %p208 = por %p206, %p207
      %p210 = scmp.ne.s32.totalorder %s193, %s209
      %p211 = scmp.eq.s32.totalorder %s28, 0
      %p212 = por %p210, %p211
      %p213 = scmp.le.s32.totalorder 1, %s22
      %p214 = scmp.lt.s32.totalorder %s22, 3
      %p215 = pnand %p213, %p214
      %p216 = pneg %p215
      // Predicated region
      $region9: #{tpu_custom_call.1} parent=5 // pred_check
        _
      $region10: #{tpu_custom_call.1} parent=5 // pred_check_branch
        %218 = sbr.rel (%p215) target = $region12
      $region11: #{tpu_custom_call.1} parent=5 // pred_region
        %s219 = ssub.s32 %s22, 1
        // Predicated region
        $region13: #{tpu_custom_call.1} parent=11 // pred_check
          %p220 = pneg %p95
        $region14: #{tpu_custom_call.1} parent=11 // pred_check_branch
          %222 = sbr.rel (%p220) target = $region16
        $region15: #{tpu_custom_call.1} parent=11 // pred_region
          _
        $region16: #{tpu_custom_call.1} parent=11 // pred_fallthru
          _
        // Predicated region
        $region17: #{tpu_custom_call.1} parent=11 // pred_check
          %p223 = pneg %p116
        $region18: #{tpu_custom_call.1} parent=11 // pred_check_branch
          %225 = sbr.rel (%p223) target = $region20
        $region19: #{tpu_custom_call.1} parent=11 // pred_region
          _
        $region20: #{tpu_custom_call.1} parent=11 // pred_fallthru
          _
        // Predicated region
        $region21: #{tpu_custom_call.1} parent=11 // pred_check
          %p226 = pneg %p137
        $region22: #{tpu_custom_call.1} parent=11 // pred_check_branch
          %228 = sbr.rel (%p226) target = $region24
        $region23: #{tpu_custom_call.1} parent=11 // pred_region
          _
        $region24: #{tpu_custom_call.1} parent=11 // pred_fallthru
          _
        // Predicated region
        $region25: #{tpu_custom_call.1} parent=11 // pred_check
          %p229 = pneg %p158
        $region26: #{tpu_custom_call.1} parent=11 // pred_check_branch
          %231 = sbr.rel (%p229) target = $region28
        $region27: #{tpu_custom_call.1} parent=11 // pred_region
          _
        $region28: #{tpu_custom_call.1} parent=11 // pred_fallthru
          _
        // Predicated region
        $region29: #{tpu_custom_call.1} parent=11 // pred_check
          %p232 = pneg %p179
        $region30: #{tpu_custom_call.1} parent=11 // pred_check_branch
          %234 = sbr.rel (%p232) target = $region32
        $region31: #{tpu_custom_call.1} parent=11 // pred_region
          _
        $region32: #{tpu_custom_call.1} parent=11 // pred_fallthru
          _
      $region12: #{tpu_custom_call.1} parent=5 // pred_fallthru
        _
      %p235 = scmp.lt.s32.totalorder %s22, 2
      // Predicated region
      $region33: #{tpu_custom_call.1} parent=5 // pred_check
        %p236 = pneg %p235
      $region34: #{tpu_custom_call.1} parent=5 // pred_check_branch
        %238 = sbr.rel (%p236) target = $region36
      $region35: #{tpu_custom_call.1} parent=5 // pred_region
        // Predicated region
        $region37: #{tpu_custom_call.1} parent=35 // pred_check
          %p239 = pneg %p42
        $region38: #{tpu_custom_call.1} parent=35 // pred_check_branch
          %241 = sbr.rel (%p239) target = $region40
        $region39: #{tpu_custom_call.1} parent=35 // pred_region
          %s242 = sand.u32 %s32, 1
          %s243 = scalar_lea.sflag [#allocation3], %s242
          %s244 = sand.u32 %s32, 1
          %s245 = smul.addr %s244, 8
          %s246 = scalar_lea.vmem [#allocation2], %s245
          %248 = vsyncadd %s243, 0
          %s249 = smul.addr %s22, 2
          %s250 = smul.addr %s249, 4
          %s251 = scalar_lea.hbm %s0, %s250
          %s253 = sshll.u32 %s251, 4
          %s254 = int_to_ptr.hbm [resolvable:$true] %s253
          %s255 = sshll.u32 %s246, 4
          %s256 = int_to_ptr.vmem [resolvable:$true] %s255
          %258 = dma.hbm_to_vmem [thread:$0]  %s254, 128, %s256, %s243
        $region40: #{tpu_custom_call.1} parent=35 // pred_fallthru
          _
        // Predicated region
        $region41: #{tpu_custom_call.1} parent=35 // pred_check
          %p259 = pneg %p68
        $region42: #{tpu_custom_call.1} parent=35 // pred_check_branch
          %261 = sbr.rel (%p259) target = $region44
        $region43: #{tpu_custom_call.1} parent=35 // pred_region
          %s262 = sand.u32 %s58, 1
          %s263 = scalar_lea.sflag [#allocation6], %s262
          %s264 = sand.u32 %s58, 1
          %s265 = smul.addr %s264, 8
          %s266 = scalar_lea.vmem [#allocation5], %s265
          %268 = vsyncadd %s263, 0
          %s269 = smul.addr %s22, 2
          %s270 = smul.addr %s269, 4
          %s271 = scalar_lea.hbm %s1, %s270
          %s273 = sshll.u32 %s271, 4
          %s274 = int_to_ptr.hbm [resolvable:$true] %s273
          %s275 = sshll.u32 %s266, 4
          %s276 = int_to_ptr.vmem [resolvable:$true] %s275
          %278 = dma.hbm_to_vmem [thread:$0]  %s274, 128, %s276, %s263
        $region44: #{tpu_custom_call.1} parent=35 // pred_fallthru
          _
      $region36: #{tpu_custom_call.1} parent=5 // pred_fallthru
        _
      %p279 = scmp.le.s32.totalorder 1, %s22
      %p280 = scmp.lt.s32.totalorder %s22, 3
      %p281 = pnand %p279, %p280
      %p282 = pneg %p281
      // Predicated region
      $region45: #{tpu_custom_call.1} parent=5 // pred_check
        _
      $region46: #{tpu_custom_call.1} parent=5 // pred_check_branch
        %284 = sbr.rel (%p281) target = $region48
      $region47: #{tpu_custom_call.1} parent=5 // pred_region
        %s285 = ssub.s32 %s22, 1
        %s286 = sand.u32 %s35, 1
        %s287 = scalar_lea.sflag [#allocation3], %s286
        %s288 = sand.u32 %s35, 1
        %s289 = smul.addr %s288, 8
        %s290 = scalar_lea.vmem [#allocation2], %s289
        // Predicated region
        $region49: #{tpu_custom_call.1} parent=47 // pred_check
          %p291 = pneg %p48
        $region50: #{tpu_custom_call.1} parent=47 // pred_check_branch
          %293 = sbr.rel (%p291) target = $region52
        $region51: #{tpu_custom_call.1} parent=47 // pred_region
          %295 = dma.done %s287, 128
        $region52: #{tpu_custom_call.1} parent=47 // pred_fallthru
          _
        %s296 = sand.u32 %s61, 1
        %s297 = scalar_lea.sflag [#allocation6], %s296
        %s298 = sand.u32 %s61, 1
        %s299 = smul.addr %s298, 8
        %s300 = scalar_lea.vmem [#allocation5], %s299
        // Predicated region
        $region53: #{tpu_custom_call.1} parent=47 // pred_check
          %p301 = pneg %p74
        $region54: #{tpu_custom_call.1} parent=47 // pred_check_branch
          %303 = sbr.rel (%p301) target = $region56
        $region55: #{tpu_custom_call.1} parent=47 // pred_region
          %305 = dma.done %s297, 128
        $region56: #{tpu_custom_call.1} parent=47 // pred_fallthru
          _
        %s306 = sand.u32 %s35, 1
        %s307 = scalar_lea.sflag [#allocation3], %s306
        %s308 = sand.u32 %s35, 1
        %s309 = smul.addr %s308, 8
        %s310 = scalar_lea.vmem [#allocation2], %s309
        %p311 = pneg %p48
        %p312 = pneg %p45
        %s313 = sand.u32 %s61, 1
        %s314 = scalar_lea.sflag [#allocation6], %s313
        %s315 = sand.u32 %s61, 1
        %s316 = smul.addr %s315, 8
        %s317 = scalar_lea.vmem [#allocation5], %s316
        %p318 = pneg %p74
        %p319 = pneg %p71
        %p320 = pneg %p95
        %p321 = pneg %p92
        %p322 = pneg %p116
        %p323 = pneg %p113
        %p324 = pneg %p137
        %p325 = pneg %p134
        %p326 = pneg %p158
        %p327 = pneg %p155
        %p328 = pneg %p179
        %p329 = pneg %p176
        %p330 = pneg %p205
        %p331 = pneg %p202
        %s332 = sand.u32 %s192, 1
        %s333 = scalar_lea.sflag [#allocation4], %s332
        %s334 = sand.u32 %s192, 1
        %s335 = smul.addr %s334, 8
        %s336 = scalar_lea.vmem [#allocation7], %s335
        %v337 = vld [vmem:[%s290] sm:$0xff]
        %v338 = vld [vmem:[%s300] sm:$0xff]
        %v339 = vld [vmem:[%s2] sm:$0x3]
        %341 = vst [vmem:[#allocation1] ss:$2 sm:$0xff] %v337
        %v342 = vld.sshfl [vmem:[#allocation1] sm:$0xff pattern:$0x75316420]
        %v343 = vld.sshfl [vmem:[#allocation1 + $0x8] sm:$0xff pattern:$0x75316420]
        %vm344 = vcmask 31744
        %v346 = vsel %vm344, %v339, 0
        %vm348 = vcmask 1043456
        %v349 = vsel %vm348, %v342, 0
        %v351 = vsel %vm348, %v343, 0
        %353 = vmatpush.msra.mxu0 0.0
        %354 = vmatpush.msra.mxu0 0.0
        %355 = vmatpush.msra.mxu0 0.0
        %356 = vmatpush.msra.mxu0 0.0
        %357 = vmatpush.msra.mxu0 0.0
        %358 = vmatpush.msra.mxu0 0.0
        %359 = vmatpush.msra.mxu0 0.0
        %360 = vmatpush.msra.mxu0 0.0
        %361 = vmatpush.msra.mxu0 0.0
        %362 = vmatpush.msra.mxu0 0.0
        %363 = vmatpush.msra.mxu0 0.0
        %364 = vmatpush.msra.mxu0 0.0
        %365 = vmatpush.msra.mxu0 0.0
        %366 = vmatpush.msra.mxu0 0.0
        %367 = vmatpush.msra.mxu0 0.0
        %368 = vmatpush.msra.mxu0 %v349
        %369 = vmatmul.f32.gmra.mxu0 %v346
        %v370 = vpop.f32.mrf.mxu0
        %v371 = vadd.f32 0.0, %v370
        %372 = vdwg.mxu0
        %373 = vmatpush.msra.mxu0 0.0
        %374 = vmatpush.msra.mxu0 0.0
        %375 = vmatpush.msra.mxu0 0.0
        %376 = vmatpush.msra.mxu0 0.0
        %377 = vmatpush.msra.mxu0 0.0
        %378 = vmatpush.msra.mxu0 0.0
        %379 = vmatpush.msra.mxu0 0.0
        %380 = vmatpush.msra.mxu0 0.0
        %381 = vmatpush.msra.mxu0 0.0
        %382 = vmatpush.msra.mxu0 0.0
        %383 = vmatpush.msra.mxu0 0.0
        %384 = vmatpush.msra.mxu0 0.0
        %385 = vmatpush.msra.mxu0 0.0
        %386 = vmatpush.msra.mxu0 0.0
        %387 = vmatpush.msra.mxu0 0.0
        %388 = vmatpush.msra.mxu0 %v351
        %389 = vmatmul.f32.gmra.mxu0 %v346
        %v390 = vpop.f32.mrf.mxu0
        %v391 = vadd.f32 0.0, %v390
        %392 = vdwg.mxu0
        %v393 = vld [vmem:[%s3] sm:$0x3]
        %395 = vst [vmem:[#allocation1] ss:$2 sm:$0xff] %v338
        %v396 = vld.sshfl [vmem:[#allocation1] sm:$0xff pattern:$0x75316420]
        %v397 = vld.sshfl [vmem:[#allocation1 + $0x8] sm:$0xff pattern:$0x75316420]
        %v399 = vsel %vm344, %v393, 0
        %v401 = vsel %vm348, %v396, 0
        %v403 = vsel %vm348, %v397, 0
        %405 = vmatpush.msra.mxu0 0.0
        %406 = vmatpush.msra.mxu0 0.0
        %407 = vmatpush.msra.mxu0 0.0
        %408 = vmatpush.msra.mxu0 0.0
        %409 = vmatpush.msra.mxu0 0.0
        %410 = vmatpush.msra.mxu0 0.0
        %411 = vmatpush.msra.mxu0 0.0
        %412 = vmatpush.msra.mxu0 0.0
        %413 = vmatpush.msra.mxu0 0.0
        %414 = vmatpush.msra.mxu0 0.0
        %415 = vmatpush.msra.mxu0 0.0
        %416 = vmatpush.msra.mxu0 0.0
        %417 = vmatpush.msra.mxu0 0.0
        %418 = vmatpush.msra.mxu0 0.0
        %419 = vmatpush.msra.mxu0 0.0
        %420 = vmatpush.msra.mxu0 %v401
        %421 = vmatmul.f32.gmra.mxu0 %v399
        %v422 = vpop.f32.mrf.mxu0
        %v423 = vadd.f32 0.0, %v422
        %424 = vdwg.mxu0
        %425 = vmatpush.msra.mxu0 0.0
        %426 = vmatpush.msra.mxu0 0.0
        %427 = vmatpush.msra.mxu0 0.0
        %428 = vmatpush.msra.mxu0 0.0
        %429 = vmatpush.msra.mxu0 0.0
        %430 = vmatpush.msra.mxu0 0.0
        %431 = vmatpush.msra.mxu0 0.0
        %432 = vmatpush.msra.mxu0 0.0
        %433 = vmatpush.msra.mxu0 0.0
        %434 = vmatpush.msra.mxu0 0.0
        %435 = vmatpush.msra.mxu0 0.0
        %436 = vmatpush.msra.mxu0 0.0
        %437 = vmatpush.msra.mxu0 0.0
        %438 = vmatpush.msra.mxu0 0.0
        %439 = vmatpush.msra.mxu0 0.0
        %440 = vmatpush.msra.mxu0 %v403
        %441 = vmatmul.f32.gmra.mxu0 %v399
        %v442 = vpop.f32.mrf.mxu0
        %v443 = vadd.f32 0.0, %v442
        %444 = vdwg.mxu0
        %v447 = vrot.slane %v423, 6
        %v448 = vrot.slane %v443, 6
        %vm451 = vcmask 1041408
        %v452 = vsel %vm451, %v371, %v447
        %v453 = vsel %vm451, %v391, %v448
        %v454 = vld [vmem:[%s4] sm:$0xf]
        %456 = vset.pattern.permute.xlu0 0
        %457 = vperm.xlu0 %456, %v454
        %v458 = vpop.permute.xlu0 %457
        %v460 = vadd.f32 %v452, %v458
        %v461 = vadd.f32 %v453, %v458
        %v462 = vxor.u32 %v460, 2147483648
        %v463 = vxor.u32 %v461, 2147483648
        %v464 = vmul.f32 %v462, 1.442695
        %v465 = vpow.pop %v464
        %v466 = vmul.f32 %v463, 1.442695
        %v467 = vpow.pop %v466
        %v468 = vadd.f32 %v465, 1.0
        %v469 = vadd.f32 %v467, 1.0
        %v470 = vrcp.pop %v468
        %v471 = vmul.f32 %v468, %v470
        %v472 = vsub.f32 1.0, %v471
        %v473 = vmul.f32 %v470, %v472
        %v474 = vadd.f32 %v470, %v473
        %vm475 = vweird.f32 %v468
        %vm476 = vweird.f32 %v470
        %vm477 = vmor %vm475, %vm476
        %v478 = vsel %vm477, %v470, %v474
        %v479 = vand.u32 2147483647, %v468
        %vm480 = vcmp.eq.f32.partialorder %v479, 8.507059e+37
        %v481 = vand.u32 %v468, 2147483648
        %v482 = vor.u32 1.1754944e-38, %v481
        %v483 = vsel %vm480, %v482, %v478
        %v484 = vmul.f32 1.0, %v483
        %v485 = vrcp.pop %v469
        %v486 = vmul.f32 %v469, %v485
        %v487 = vsub.f32 1.0, %v486
        %v488 = vmul.f32 %v485, %v487
        %v489 = vadd.f32 %v485, %v488
        %vm490 = vweird.f32 %v469
        %vm491 = vweird.f32 %v485
        %vm492 = vmor %vm490, %vm491
        %v493 = vsel %vm492, %v485, %v489
        %v494 = vand.u32 2147483647, %v469
        %vm495 = vcmp.eq.f32.partialorder %v494, 8.507059e+37
        %v496 = vand.u32 %v469, 2147483648
        %v497 = vor.u32 1.1754944e-38, %v496
        %v498 = vsel %vm495, %v497, %v493
        %v499 = vmul.f32 1.0, %v498
        %v500 = vld [vmem:[%s6] sm:$0x3]
        %v502 = vperm.slane %v500, 0
        %v503 = vperm.slane %v500, 1
        %v506 = vmul.f32 %v484, %v502
        %v507 = vmul.f32 %v499, %v503
        %vm508 = vcmask 1043458
        %v509 = vsel %vm508, %v506, 0.0
        %v510 = vsel %vm508, %v507, 0.0
        %v511 = vadd.f32 %v509, %v510
        %512 = vadd.xlane.f32.xlu0 %v511
        %v513 = vpop.xlane.xlu0 %512
        %v516 = vrot.slane %v484, 6
        %v517 = vrot.slane %v499, 6
        %v520 = vmul.f32 %v513, %v516
        %v521 = vmul.f32 %v513, %v517
        %v522 = vld [vmem:[%s5] sm:$0xf]
        %v525 = vrot.slane %v520, 2
        %v526 = vrot.slane %v521, 2
        %vm527 = vcmask 15360
        %v529 = vsel %vm527, %v522, 0
        %v531 = vsel %vm451, %v525, 0
        %v533 = vsel %vm451, %v526, 0
        %535 = vmatpush.msra.mxu0 0.0
        %536 = vmatpush.msra.mxu0 0.0
        %537 = vmatpush.msra.mxu0 0.0
        %538 = vmatpush.msra.mxu0 0.0
        %539 = vmatpush.msra.mxu0 0.0
        %540 = vmatpush.msra.mxu0 0.0
        %541 = vmatpush.msra.mxu0 0.0
        %542 = vmatpush.msra.mxu0 0.0
        %543 = vmatpush.msra.mxu0 0.0
        %544 = vmatpush.msra.mxu0 0.0
        %545 = vmatpush.msra.mxu0 0.0
        %546 = vmatpush.msra.mxu0 0.0
        %547 = vmatpush.msra.mxu0 0.0
        %548 = vmatpush.msra.mxu0 0.0
        %549 = vmatpush.msra.mxu0 0.0
        %550 = vmatpush.msra.mxu0 %v531
        %551 = vmatmul.f32.gmra.mxu0 %v529
        %v552 = vpop.f32.mrf.mxu0
        %v553 = vadd.f32 0.0, %v552
        %554 = vdwg.mxu0
        %555 = vmatpush.msra.mxu0 0.0
        %556 = vmatpush.msra.mxu0 0.0
        %557 = vmatpush.msra.mxu0 0.0
        %558 = vmatpush.msra.mxu0 0.0
        %559 = vmatpush.msra.mxu0 0.0
        %560 = vmatpush.msra.mxu0 0.0
        %561 = vmatpush.msra.mxu0 0.0
        %562 = vmatpush.msra.mxu0 0.0
        %563 = vmatpush.msra.mxu0 0.0
        %564 = vmatpush.msra.mxu0 0.0
        %565 = vmatpush.msra.mxu0 0.0
        %566 = vmatpush.msra.mxu0 0.0
        %567 = vmatpush.msra.mxu0 0.0
        %568 = vmatpush.msra.mxu0 0.0
        %569 = vmatpush.msra.mxu0 0.0
        %570 = vmatpush.msra.mxu0 %v533
        %571 = vmatmul.f32.gmra.mxu0 %v529
        %v572 = vpop.f32.mrf.mxu0
        %v573 = vadd.f32 0.0, %v572
        %574 = vdwg.mxu0
        %v577 = vrot.slane %v573, 4
        %v578 = vsel %vm348, %v553, %v577
        %v580 = vmul.f32 %v337, %v578
        %581 = vst [vmem:[%s336] sm:$0xff] %v580
        %s582 = sand.u32 %s192, 1
        %s583 = scalar_lea.sflag [#allocation4], %s582
        %s584 = sand.u32 %s192, 1
        %s585 = smul.addr %s584, 8
        %s586 = scalar_lea.vmem [#allocation7], %s585
        // Predicated region
        $region57: #{tpu_custom_call.1} parent=47 // pred_check
          %p587 = pneg %p202
        $region58: #{tpu_custom_call.1} parent=47 // pred_check_branch
          %589 = sbr.rel (%p587) target = $region60
        $region59: #{tpu_custom_call.1} parent=47 // pred_region
          %591 = vsyncadd %s583, 0
          %s592 = smul.addr %s27, 2
          %s593 = smul.addr %s592, 4
          %s594 = scalar_lea.hbm %s7, %s593
          %s596 = sshll.u32 %s586, 4
          %s597 = int_to_ptr.vmem [resolvable:$true] %s596
          %s598 = sshll.u32 %s594, 4
          %s599 = int_to_ptr.hbm [resolvable:$true] %s598
          %601 = dma.vmem_to_hbm [thread:$0]  %s597, 128, %s599, %s583
        $region60: #{tpu_custom_call.1} parent=47 // pred_fallthru
          _
      $region48: #{tpu_custom_call.1} parent=5 // pred_fallthru
        _
      %p602 = scmp.le.s32.totalorder 2, %s22
      // Predicated region
      $region61: #{tpu_custom_call.1} parent=5 // pred_check
        %p603 = pneg %p602
      $region62: #{tpu_custom_call.1} parent=5 // pred_check_branch
        %605 = sbr.rel (%p603) target = $region64
      $region63: #{tpu_custom_call.1} parent=5 // pred_region
        %s606 = ssub.s32 %s22, 2
        // Predicated region
        $region65: #{tpu_custom_call.1} parent=63 // pred_check
          %p607 = pneg %p208
        $region66: #{tpu_custom_call.1} parent=63 // pred_check_branch
          %609 = sbr.rel (%p607) target = $region68
        $region67: #{tpu_custom_call.1} parent=63 // pred_region
          %s610 = sand.u32 %s193, 1
          %s611 = scalar_lea.sflag [#allocation4], %s610
          %s612 = sand.u32 %s193, 1
          %s613 = smul.addr %s612, 8
          %s614 = scalar_lea.vmem [#allocation7], %s613
          %616 = dma.done %s611, 128
        $region68: #{tpu_custom_call.1} parent=63 // pred_fallthru
          _
      $region64: #{tpu_custom_call.1} parent=5 // pred_fallthru
        _
    $region6: #{tpu_custom_call.1} parent=1 // loop_footer
      %s26 = sadd.s32 1, %s22
    $region7: #{tpu_custom_call.1} parent=1 // loop_footer_branch
      %21 = sbr.rel target = $region3
    $region8: #{tpu_custom_call.1} parent=1 // loop_exit
      _
    %617 = vsyncpa [#allocation3], 1
    %s618 = scalar_lea.sflag [#allocation3], 1
    %619 = vsyncpa %s618, 1
    %620 = vsyncpa [#allocation6], 1
    %s621 = scalar_lea.sflag [#allocation6], 1
    %622 = vsyncpa %s621, 1
    %623 = vsyncpa [#allocation4], 1
    %s624 = scalar_lea.sflag [#allocation4], 1
    %625 = vsyncpa %s624, 1

</llo_original>
